<compile_context>
chip_gen: v7x
topology: tpu7x:2x2x1
jax: 0.10.0
libtpu: 0.0.40
codegen_flags: <defaults>
</compile_context>

<pallas_src>
import functools

import jax
import jax.numpy as jnp
from jax.experimental import pallas as pl
from jax.experimental.pallas import tpu as pltpu


# ----------------------------- Pallas kernel -------------------------------
def patch_embed_kernel(tile_b, patch_ref, w_ref, pos_ref, out_ref):
    # patch_ref: (TILE_B, N, K) bf16  im2col patches for TILE_B whole images
    # w_ref:     (K, E)         bf16  spectrally-normalized conv weight (grid-invariant)
    # pos_ref:   (N, E)         f32   bias + sin(positions[1:])         (grid-invariant)
    # out_ref:   (TILE_B, N, E) f32
    w = w_ref[...]          # hoisted out of the loop: loaded once per grid step
    pos = pos_ref[...]
    for b in range(tile_b):                       # small static loop over whole images
        proj = jnp.dot(patch_ref[b], w,
                       preferred_element_type=jnp.float32)   # MXU, f32 accumulation
        out_ref[b] = (proj + pos).astype(out_ref.dtype)       # fused bias + pos epilogue


def _pick_tile_b(batch, n_patches, target_rows=1024):
    """Largest divisor of `batch` whose tile covers <= target_rows patch rows
    while leaving >= 2 grid steps (so v7x's two TensorCores both get work)."""
    tile = 1
    for t in range(1, batch + 1):
        if batch % t != 0:
            continue
        if t * n_patches > target_rows:
            continue
        if batch // t < 2 and batch >= 2:
            continue
        tile = t
    return tile


@functools.partial(jax.jit, static_argnames=("patch_size",))
def patch_embedding_forward(x, weight_sn, bias, cls_token, positions, patch_size):
    """x: (B, C, H, W) NCHW float32. Returns (B, N+1, E) float32."""
    B, C, H, W = x.shape
    P = patch_size
    E = weight_sn.shape[0]
    hP, wP = H // P, W // P
    N = hP * wP
    K = C * P * P

    # im2col in (c, kh, kw) order to match the Conv2d weight flattening.  The
    # bf16 cast fuses into the same XLA transpose pass; no zero-pad round trip.
    # TODO(synk): fold im2col fully into the kernel (DMA NCHW row bands per
    # (batch, patch-row) and reorder in VMEM) to drop this transpose pass too.
    patches = x.reshape(B, C, hP, P, wP, P)
    patches = patches.transpose(0, 2, 4, 1, 3, 5).reshape(B, N, K)
    patches = patches.astype(jnp.bfloat16)

    # (K, E) weight; bf16 operands, f32 accumulation (documented contract).
    # v7x note: keep bf16 (no int MXU path there); at production prefer K/E
    # that are 256-multiples for full 256x256 MXU fill once compute-bound.
    w_flat = weight_sn.reshape(E, K).T.astype(jnp.bfloat16)

    pos_sin = jnp.sin(positions)                                     # (N+1, E)
    pos_patch = (pos_sin[1:] + bias[None, :]).astype(jnp.float32)    # (N, E)

    tile_b = _pick_tile_b(B, N)
    grid = (B // tile_b,)

    # VMEM budget: double-buffered patch + out tiles, plus the resident weight
    # and pos tables (counted x2 to be safe), plus headroom for Mosaic scratch.
    # Stays far below v7x's 64 MiB physical VMEM at production sizes.
    vmem_bytes = 2 * (tile_b * N * K * 2 + tile_b * N * E * 4
                      + K * E * 2 + N * E * 4)
    vmem_limit = int(min(max(vmem_bytes + (4 << 20), 16 << 20), 100 << 20))

    proj = pl.pallas_call(
        functools.partial(patch_embed_kernel, tile_b),
        out_shape=jax.ShapeDtypeStruct((B, N, E), jnp.float32),
        grid_spec=pltpu.PrefetchScalarGridSpec(
            num_scalar_prefetch=0,
            grid=grid,
            in_specs=[
                pl.BlockSpec((tile_b, N, K), lambda g: (g, 0, 0)),
                pl.BlockSpec((K, E), lambda g: (0, 0)),   # grid-invariant, resident
                pl.BlockSpec((N, E), lambda g: (0, 0)),   # grid-invariant, resident
            ],
            out_specs=pl.BlockSpec((tile_b, N, E), lambda g: (g, 0, 0)),
        ),
        compiler_params=pltpu.CompilerParams(
            dimension_semantics=("parallel",),            # >=2 steps feeds both v7x TCs
            vmem_limit_bytes=vmem_limit),
    )(patches, w_flat, pos_patch)

    # Tiny epilogue: cls row (no conv bias on it, per the module) + concat.
    # TODO(synk): writing rows 1..N of a (B, N+1, E) output directly from the
    # kernel would drop this last copy, but needs an off-by-one (sublane-
    # unaligned) store; kept host-side for robust lowering.
    cls_row = cls_token.reshape(1, 1, E) + pos_sin[0][None, None, :]
    out = jnp.concatenate([jnp.broadcast_to(cls_row, (B, 1, E)), proj], axis=1)
    return out


# ------------------------ parameter setup (glue) ----------------------------
def spectral_normalize(weight, key, n_power_iterations=1, eps=1e-12):
    """Mimics torch.nn.utils.spectral_norm on a Conv2d weight (E, C, P, P)."""
    E = weight.shape[0]
    w_mat = weight.reshape(E, -1)
    u = jax.random.normal(key, (E,), dtype=weight.dtype)
    u = u / (jnp.linalg.norm(u) + eps)
    v = None
    for _ in range(n_power_iterations):
        v = w_mat.T @ u
        v = v / (jnp.linalg.norm(v) + eps)
        u = w_mat @ v
        u = u / (jnp.linalg.norm(u) + eps)
    sigma = u @ (w_mat @ v)
    return weight / sigma


# --------------------------------- main -------------------------------------
if __name__ == "__main__":
    # Small config consistent with the module (patch == stride, image 32).
    B, C, IMG = 2, 3, 32
    P = 4                                         # patch_size == stride_size
    E = 128                                       # emb_size (lane-friendly)
    N = (IMG // P) * (IMG // P)                   # 64 patches
    num_patches = ((IMG - P + P) // P) ** 2 + 1   # 65 (incl. cls token)

    key = jax.random.PRNGKey(0)
    kx, kw, kb, kc, kp, ku = jax.random.split(key, 6)

    x = jax.random.normal(kx, (B, C, IMG, IMG), dtype=jnp.float32)
    conv_w = jax.random.normal(kw, (E, C, P, P), dtype=jnp.float32) * 0.05
    conv_b = jax.random.normal(kb, (E,), dtype=jnp.float32) * 0.05
    cls_token = jax.random.normal(kc, (1, 1, E), dtype=jnp.float32)
    positions = jax.random.normal(kp, (num_patches, E), dtype=jnp.float32)

    # Spectral norm of the conv weight (one power iteration, like PyTorch).
    conv_w_sn = spectral_normalize(conv_w, ku, n_power_iterations=1)

    out = patch_embedding_forward(x, conv_w_sn, conv_b, cls_token, positions,
                                  patch_size=P)
    out = jax.block_until_ready(out)

    # Reference: same bf16-rounded operands through a plain lax conv (f32
    # accumulation), then bias, cls concat + sin(positions), as in the
    # PyTorch forward.  (bf16 operand contract is documented above.)
    x_r = x.astype(jnp.bfloat16).astype(jnp.float32)
    w_r = conv_w_sn.astype(jnp.bfloat16).astype(jnp.float32)
    ref_conv = jax.lax.conv_general_dilated(
        x_r, w_r, window_strides=(P, P), padding="VALID",
        dimension_numbers=("NCHW", "OIHW", "NCHW"))            # (B, E, h, w)
    ref_conv = ref_conv + conv_b.reshape(1, E, 1, 1)
    ref_seq = ref_conv.reshape(B, E, N).transpose(0, 2, 1)     # b (h w) e
    cls_rep = jnp.broadcast_to(cls_token, (B, 1, E))
    ref = jnp.concatenate([cls_rep, ref_seq], axis=1) + jnp.sin(positions)

    assert out.shape == (B, num_patches, E)
    err = float(jnp.max(jnp.abs(out - ref)))
    assert jnp.allclose(out, ref, atol=1e-3, rtol=1e-3), err

    print("KERNEL_OK")
</pallas_src>

<mosaic_0001>
module attributes {stable_mosaic.version = 11 : i64} {
  func.func @patch_embed_kernel(%arg0: i32, %arg1: memref<1x64x48xbf16, #tpu.memory_space<vmem>>, %arg2: memref<48x128xbf16, #tpu.memory_space<vmem>>, %arg3: memref<64x128xf32, #tpu.memory_space<vmem>>, %arg4: memref<1x64x128xf32, #tpu.memory_space<vmem>>) attributes {dimension_semantics = [#tpu.dimension_semantics<parallel>], iteration_bounds = array<i64: 2>, scalar_prefetch = 0 : i64, scratch_operands = 0 : i64, tpu.core_type = #tpu.core_type<tc>, window_params = [{transform_indices = @transform_0, window_bounds = array<i64: 1, 64, 48>}, {pipeline_mode = #tpu.pipeline_mode<synchronous>, transform_indices = @transform_1, window_bounds = array<i64: 48, 128>}, {pipeline_mode = #tpu.pipeline_mode<synchronous>, transform_indices = @transform_2, window_bounds = array<i64: 64, 128>}, {transform_indices = @transform_3, window_bounds = array<i64: 1, 64, 128>}]} {
    %c0 = arith.constant 0 : index
    %c0_0 = arith.constant 0 : index
    %0 = vector.load %arg2[%c0, %c0_0] : memref<48x128xbf16, #tpu.memory_space<vmem>>, vector<48x128xbf16>
    %c0_1 = arith.constant 0 : index
    %c0_2 = arith.constant 0 : index
    %1 = vector.load %arg3[%c0_1, %c0_2] : memref<64x128xf32, #tpu.memory_space<vmem>>, vector<64x128xf32>
    %c0_3 = arith.constant 0 : index
    %c0_4 = arith.constant 0 : index
    %c0_5 = arith.constant 0 : index
    %2 = vector.load %arg1[%c0_3, %c0_4, %c0_5] : memref<1x64x48xbf16, #tpu.memory_space<vmem>>, vector<1x64x48xbf16>
    %3 = vector.shape_cast %2 : vector<1x64x48xbf16> to vector<64x48xbf16>
    %cst = arith.constant dense<0.000000e+00> : vector<64x128xf32>
    %4 = tpu.matmul %3, %0, %cst {dimension_numbers = #tpu.dot_dimension_numbers<[1], [0], [0], [1], [0, 0, 1, 1], [], []>} : vector<64x48xbf16>, vector<48x128xbf16>, vector<64x128xf32> -> vector<64x128xf32>
    %5 = arith.addf %4, %1 : vector<64x128xf32>
    %c0_6 = arith.constant 0 : index
    %c0_7 = arith.constant 0 : index
    %c0_8 = arith.constant 0 : index
    %6 = vector.load %arg4[%c0_6, %c0_7, %c0_8] : memref<1x64x128xf32, #tpu.memory_space<vmem>>, vector<1x64x128xf32>
    %7 = vector.shape_cast %6 : vector<1x64x128xf32> to vector<64x128xf32>
    %8 = vector.shape_cast %5 : vector<64x128xf32> to vector<1x64x128xf32>
    tpu.vector_store %arg4[%c0_6, %c0_7, %c0_8], %8 {strides = array<i32>} : memref<1x64x128xf32, #tpu.memory_space<vmem>>, vector<1x64x128xf32>,
    return
  }
  func.func @transform_0(%arg0: i32) -> (i32, i32, i32) {
    %c0_i32 = arith.constant 0 : i32
    %c0_i32_0 = arith.constant 0 : i32
    %c0_i32_1 = arith.constant 0 : i32
    return %arg0, %c0_i32, %c0_i32_0 : i32, i32, i32
  }
  func.func @transform_1(%arg0: i32) -> (i32, i32) {
    %c0_i32 = arith.constant 0 : i32
    %c0_i32_0 = arith.constant 0 : i32
    %c0_i32_1 = arith.constant 0 : i32
    return %c0_i32, %c0_i32_0 : i32, i32
  }
  func.func @transform_2(%arg0: i32) -> (i32, i32) {
    %c0_i32 = arith.constant 0 : i32
    %c0_i32_0 = arith.constant 0 : i32
    %c0_i32_1 = arith.constant 0 : i32
    return %c0_i32, %c0_i32_0 : i32, i32
  }
  func.func @transform_3(%arg0: i32) -> (i32, i32, i32) {
    %c0_i32 = arith.constant 0 : i32
    %c0_i32_0 = arith.constant 0 : i32
    %c0_i32_1 = arith.constant 0 : i32
    return %arg0, %c0_i32, %c0_i32_0 : i32, i32, i32
  }
}

</mosaic_0001>

<llo_original>
// kernel: sin.1
$region0: #{sin.1}
  #allocation0 [shape = 's32[1]{0}', space=sflag, size = 0x4, scoped, tag = 'scoped memory for sin.1']
  %s0 = inlined_call_operand.vmem [shape: f32[65,128], index: 0, kind: input, shape index: {}]
  %s1 = inlined_call_operand.vmem [shape: f32[65,128], index: 1, kind: output, shape index: {}]
  %v2 = vld [vmem:[%s0] sm:$0xff]
  %v3 = vand.u32 2147483647, %v2
  %vm4 = vcmp.le.f32.partialorder %v3, 0.7853982
  %vm5 = vcmp.lt.s32.totalorder %v2, 0
  %v6 = vand.u32 %v2, 2139095040
  %v7 = vshrl.u32 %v6, 23
  %v8 = vsub.s32 %v7, 127
  %v9 = vand.u32 2147483647, %v2
  %v10 = vand.u32 %v9, 8388607
  %v11 = vor.u32 %v10, 8388608
  %v12 = vsub.s32 0, %v11
  %v13 = vadd.s32 %v8, 1
  %vm14 = vcmp.gt.s32.totalorder %v13, 0
  %v15 = vsel %vm14, %v13, 0
  %v16 = vshrl.u32 %v15, 5
  %v17 = vand.u32 %v15, 31
  %v18 = vsub.s32 32, %v17
  %v19 = vshrl.u32 683565275, %v18
  %v20 = vshll.u32 683565275, %v17
  %v21 = vshrl.u32 2475754826, %v18
  %v22 = vor.u32 %v20, %v21
  %v23 = vshll.u32 2475754826, %v17
  %v24 = vshrl.u32 2131351028, %v18
  %v25 = vor.u32 %v23, %v24
  %v26 = vshll.u32 2131351028, %v17
  %v27 = vshrl.u32 2102212464, %v18
  %v28 = vor.u32 %v26, %v27
  %v29 = vshll.u32 2102212464, %v17
  %v30 = vshrl.u32 920167782, %v18
  %v31 = vor.u32 %v29, %v30
  %v32 = vshll.u32 920167782, %v17
  %v33 = vshrl.u32 1326507024, %v18
  %v34 = vor.u32 %v32, %v33
  %vm35 = vcmp.lt.s32.totalorder %v16, 1
  %vm36 = vcmp.lt.s32.totalorder %v16, 2
  %vm37 = vcmp.lt.s32.totalorder %v16, 3
  %vm38 = vcmp.lt.s32.totalorder %v16, 4
  %v39 = vsel %vm35, %v19, %v22
  %v40 = vsel %vm38, %v28, 2102212464
  %v41 = vsel %vm37, %v25, %v40
  %v42 = vsel %vm36, %v39, %v41
  %v43 = vsel %vm35, %v22, %v25
  %v44 = vsel %vm38, %v31, 920167782
  %v45 = vsel %vm37, %v28, %v44
  %v46 = vsel %vm36, %v43, %v45
  %v47 = vsel %vm35, %v25, %v28
  %v48 = vsel %vm38, %v34, 1326507024
  %v49 = vsel %vm37, %v31, %v48
  %v50 = vsel %vm36, %v47, %v49
  %v51 = vshll.u32 %v11, 8
  %v52 = vmul.u32.u64.compose %v51, %v50
  %v53 = vextract.low.u32 %v52
  %v54 = vextract.high.u32 %v52
  %v55 = vmul.u32.u64.compose %v51, %v46
  %v56 = vextract.low.u32 %v55
  %v57 = vextract.high.u32 %v55
  %v58 = vmul.u32 %v51, %v42
  %v59 = vadd.s32 %v54, %v56
  %vm60 = vc.u32 %v54, %v56
  %v61 = vadd.s32 %v57, 1
  %v62 = vsel %vm60, %v61, %v57
  %v63 = vadd.s32 %v58, %v62
  %v64 = vadd.s32 %v63, 536870912
  %v65 = vshrl.u32 %v64, 30
  %v66 = vshll.u32 %v65, 30
  %v67 = vsub.s32 %v63, %v66
  %vm68 = vcmp.lt.s32.totalorder %v67, 0
  %v69 = vsub.s32 0, %v67
  %v70 = vsel %vm68, %v69, %v67
  %v71 = vclz %v70
  %v72 = vsub.s32 %v71, 2
  %vm73 = vcmp.gt.s32.totalorder 0, %v72
  %v74 = vsel %vm73, 0, %v72
  %v75 = vsub.s32 32, %v74
  %v76 = vshll.u32 %v67, %v74
  %v77 = vshrl.u32 %v59, %v75
  %v78 = vor.u32 %v76, %v77
  %v79 = vsub.s32 4294967266, %v74
  %v80 = vadd.s32 %v79, 127
  %v81 = vshll.u32 %v80, 23
  %v82 = vor.u32 4788187, %v81
  %v83 = vand.u32 2147483647, %v82
  %v85 = vcvt.s32.f32 %v78
  %v86 = vmul.f32 %v85, %v83
  %v87 = vxor.u32 %v86, 2147483648
  %v88 = vsel %vm5, %v87, %v86
  %v89 = vsub.s32 4, %v65
  %v90 = vsel %vm5, %v89, %v65
  %v91 = vsel %vm4, %v2, %v88
  %v92 = vsel %vm4, 0, %v90
  %v93 = vcosq.f32.pop %v91
  %v94 = vsinq.f32.pop %v91
  %vm95 = vweird.f32 %v2
  %v96 = vadd.s32 %v92, 3
  %v97 = vand.u32 %v96, 3
  %vm98 = vcmp.lt.s32.totalorder %v97, 2
  %vm99 = vcmp.eq.s32.totalorder %v97, 0
  %v100 = vxor.u32 %v94, 2147483648
  %v101 = vsel %vm99, %v93, %v100
  %vm102 = vcmp.eq.s32.totalorder %v97, 2
  %v103 = vxor.u32 %v93, 2147483648
  %v104 = vsel %vm102, %v103, %v94
  %v105 = vsel %vm98, %v101, %v104
  %v106 = vsel %vm95, nan, %v105
  %107 = vst [vmem:[%s1] sm:$0xff] %v106
  %s108 = scalar_lea.vmem %s0, 8
  %v109 = vld [vmem:[%s108] sm:$0xff]
  %v110 = vand.u32 2147483647, %v109
  %vm111 = vcmp.le.f32.partialorder %v110, 0.7853982
  %vm112 = vcmp.lt.s32.totalorder %v109, 0
  %v113 = vand.u32 %v109, 2139095040
  %v114 = vshrl.u32 %v113, 23
  %v115 = vsub.s32 %v114, 127
  %v116 = vand.u32 2147483647, %v109
  %v117 = vand.u32 %v116, 8388607
  %v118 = vor.u32 %v117, 8388608
  %v119 = vsub.s32 0, %v118
  %v120 = vadd.s32 %v115, 1
  %vm121 = vcmp.gt.s32.totalorder %v120, 0
  %v122 = vsel %vm121, %v120, 0
  %v123 = vshrl.u32 %v122, 5
  %v124 = vand.u32 %v122, 31
  %v125 = vsub.s32 32, %v124
  %v126 = vshrl.u32 683565275, %v125
  %v127 = vshll.u32 683565275, %v124
  %v128 = vshrl.u32 2475754826, %v125
  %v129 = vor.u32 %v127, %v128
  %v130 = vshll.u32 2475754826, %v124
  %v131 = vshrl.u32 2131351028, %v125
  %v132 = vor.u32 %v130, %v131
  %v133 = vshll.u32 2131351028, %v124
  %v134 = vshrl.u32 2102212464, %v125
  %v135 = vor.u32 %v133, %v134
  %v136 = vshll.u32 2102212464, %v124
  %v137 = vshrl.u32 920167782, %v125
  %v138 = vor.u32 %v136, %v137
  %v139 = vshll.u32 920167782, %v124
  %v140 = vshrl.u32 1326507024, %v125
  %v141 = vor.u32 %v139, %v140
  %vm142 = vcmp.lt.s32.totalorder %v123, 1
  %vm143 = vcmp.lt.s32.totalorder %v123, 2
  %vm144 = vcmp.lt.s32.totalorder %v123, 3
  %vm145 = vcmp.lt.s32.totalorder %v123, 4
  %v146 = vsel %vm142, %v126, %v129
  %v147 = vsel %vm145, %v135, 2102212464
  %v148 = vsel %vm144, %v132, %v147
  %v149 = vsel %vm143, %v146, %v148
  %v150 = vsel %vm142, %v129, %v132
  %v151 = vsel %vm145, %v138, 920167782
  %v152 = vsel %vm144, %v135, %v151
  %v153 = vsel %vm143, %v150, %v152
  %v154 = vsel %vm142, %v132, %v135
  %v155 = vsel %vm145, %v141, 1326507024
  %v156 = vsel %vm144, %v138, %v155
  %v157 = vsel %vm143, %v154, %v156
  %v158 = vshll.u32 %v118, 8
  %v159 = vmul.u32.u64.compose %v158, %v157
  %v160 = vextract.low.u32 %v159
  %v161 = vextract.high.u32 %v159
  %v162 = vmul.u32.u64.compose %v158, %v153
  %v163 = vextract.low.u32 %v162
  %v164 = vextract.high.u32 %v162
  %v165 = vmul.u32 %v158, %v149
  %v166 = vadd.s32 %v161, %v163
  %vm167 = vc.u32 %v161, %v163
  %v168 = vadd.s32 %v164, 1
  %v169 = vsel %vm167, %v168, %v164
  %v170 = vadd.s32 %v165, %v169
  %v171 = vadd.s32 %v170, 536870912
  %v172 = vshrl.u32 %v171, 30
  %v173 = vshll.u32 %v172, 30
  %v174 = vsub.s32 %v170, %v173
  %vm175 = vcmp.lt.s32.totalorder %v174, 0
  %v176 = vsub.s32 0, %v174
  %v177 = vsel %vm175, %v176, %v174
  %v178 = vclz %v177
  %v179 = vsub.s32 %v178, 2
  %vm180 = vcmp.gt.s32.totalorder 0, %v179
  %v181 = vsel %vm180, 0, %v179
  %v182 = vsub.s32 32, %v181
  %v183 = vshll.u32 %v174, %v181
  %v184 = vshrl.u32 %v166, %v182
  %v185 = vor.u32 %v183, %v184
  %v186 = vsub.s32 4294967266, %v181
  %v187 = vadd.s32 %v186, 127
  %v188 = vshll.u32 %v187, 23
  %v189 = vor.u32 4788187, %v188
  %v190 = vand.u32 2147483647, %v189
  %v192 = vcvt.s32.f32 %v185
  %v193 = vmul.f32 %v192, %v190
  %v194 = vxor.u32 %v193, 2147483648
  %v195 = vsel %vm112, %v194, %v193
  %v196 = vsub.s32 4, %v172
  %v197 = vsel %vm112, %v196, %v172
  %v198 = vsel %vm111, %v109, %v195
  %v199 = vsel %vm111, 0, %v197
  %v200 = vcosq.f32.pop %v198
  %v201 = vsinq.f32.pop %v198
  %vm202 = vweird.f32 %v109
  %v203 = vadd.s32 %v199, 3
  %v204 = vand.u32 %v203, 3
  %vm205 = vcmp.lt.s32.totalorder %v204, 2
  %vm206 = vcmp.eq.s32.totalorder %v204, 0
  %v207 = vxor.u32 %v201, 2147483648
  %v208 = vsel %vm206, %v200, %v207
  %vm209 = vcmp.eq.s32.totalorder %v204, 2
  %v210 = vxor.u32 %v200, 2147483648
  %v211 = vsel %vm209, %v210, %v201
  %v212 = vsel %vm205, %v208, %v211
  %v213 = vsel %vm202, nan, %v212
  %s214 = scalar_lea.vmem %s1, 8
  %215 = vst [vmem:[%s214] sm:$0xff] %v213
  %s216 = scalar_lea.vmem %s0, 16
  %v217 = vld [vmem:[%s216] sm:$0xff]
  %v218 = vand.u32 2147483647, %v217
  %vm219 = vcmp.le.f32.partialorder %v218, 0.7853982
  %vm220 = vcmp.lt.s32.totalorder %v217, 0
  %v221 = vand.u32 %v217, 2139095040
  %v222 = vshrl.u32 %v221, 23
  %v223 = vsub.s32 %v222, 127
  %v224 = vand.u32 2147483647, %v217
  %v225 = vand.u32 %v224, 8388607
  %v226 = vor.u32 %v225, 8388608
  %v227 = vsub.s32 0, %v226
  %v228 = vadd.s32 %v223, 1
  %vm229 = vcmp.gt.s32.totalorder %v228, 0
  %v230 = vsel %vm229, %v228, 0
  %v231 = vshrl.u32 %v230, 5
  %v232 = vand.u32 %v230, 31
  %v233 = vsub.s32 32, %v232
  %v234 = vshrl.u32 683565275, %v233
  %v235 = vshll.u32 683565275, %v232
  %v236 = vshrl.u32 2475754826, %v233
  %v237 = vor.u32 %v235, %v236
  %v238 = vshll.u32 2475754826, %v232
  %v239 = vshrl.u32 2131351028, %v233
  %v240 = vor.u32 %v238, %v239
  %v241 = vshll.u32 2131351028, %v232
  %v242 = vshrl.u32 2102212464, %v233
  %v243 = vor.u32 %v241, %v242
  %v244 = vshll.u32 2102212464, %v232
  %v245 = vshrl.u32 920167782, %v233
  %v246 = vor.u32 %v244, %v245
  %v247 = vshll.u32 920167782, %v232
  %v248 = vshrl.u32 1326507024, %v233
  %v249 = vor.u32 %v247, %v248
  %vm250 = vcmp.lt.s32.totalorder %v231, 1
  %vm251 = vcmp.lt.s32.totalorder %v231, 2
  %vm252 = vcmp.lt.s32.totalorder %v231, 3
  %vm253 = vcmp.lt.s32.totalorder %v231, 4
  %v254 = vsel %vm250, %v234, %v237
  %v255 = vsel %vm253, %v243, 2102212464
  %v256 = vsel %vm252, %v240, %v255
  %v257 = vsel %vm251, %v254, %v256
  %v258 = vsel %vm250, %v237, %v240
  %v259 = vsel %vm253, %v246, 920167782
  %v260 = vsel %vm252, %v243, %v259
  %v261 = vsel %vm251, %v258, %v260
  %v262 = vsel %vm250, %v240, %v243
  %v263 = vsel %vm253, %v249, 1326507024
  %v264 = vsel %vm252, %v246, %v263
  %v265 = vsel %vm251, %v262, %v264
  %v266 = vshll.u32 %v226, 8
  %v267 = vmul.u32.u64.compose %v266, %v265
  %v268 = vextract.low.u32 %v267
  %v269 = vextract.high.u32 %v267
  %v270 = vmul.u32.u64.compose %v266, %v261
  %v271 = vextract.low.u32 %v270
  %v272 = vextract.high.u32 %v270
  %v273 = vmul.u32 %v266, %v257
  %v274 = vadd.s32 %v269, %v271
  %vm275 = vc.u32 %v269, %v271
  %v276 = vadd.s32 %v272, 1
  %v277 = vsel %vm275, %v276, %v272
  %v278 = vadd.s32 %v273, %v277
  %v279 = vadd.s32 %v278, 536870912
  %v280 = vshrl.u32 %v279, 30
  %v281 = vshll.u32 %v280, 30
  %v282 = vsub.s32 %v278, %v281
  %vm283 = vcmp.lt.s32.totalorder %v282, 0
  %v284 = vsub.s32 0, %v282
  %v285 = vsel %vm283, %v284, %v282
  %v286 = vclz %v285
  %v287 = vsub.s32 %v286, 2
  %vm288 = vcmp.gt.s32.totalorder 0, %v287
  %v289 = vsel %vm288, 0, %v287
  %v290 = vsub.s32 32, %v289
  %v291 = vshll.u32 %v282, %v289
  %v292 = vshrl.u32 %v274, %v290
  %v293 = vor.u32 %v291, %v292
  %v294 = vsub.s32 4294967266, %v289
  %v295 = vadd.s32 %v294, 127
  %v296 = vshll.u32 %v295, 23
  %v297 = vor.u32 4788187, %v296
  %v298 = vand.u32 2147483647, %v297
  %v300 = vcvt.s32.f32 %v293
  %v301 = vmul.f32 %v300, %v298
  %v302 = vxor.u32 %v301, 2147483648
  %v303 = vsel %vm220, %v302, %v301
  %v304 = vsub.s32 4, %v280
  %v305 = vsel %vm220, %v304, %v280
  %v306 = vsel %vm219, %v217, %v303
  %v307 = vsel %vm219, 0, %v305
  %v308 = vcosq.f32.pop %v306
  %v309 = vsinq.f32.pop %v306
  %vm310 = vweird.f32 %v217
  %v311 = vadd.s32 %v307, 3
  %v312 = vand.u32 %v311, 3
  %vm313 = vcmp.lt.s32.totalorder %v312, 2
  %vm314 = vcmp.eq.s32.totalorder %v312, 0
  %v315 = vxor.u32 %v309, 2147483648
  %v316 = vsel %vm314, %v308, %v315
  %vm317 = vcmp.eq.s32.totalorder %v312, 2
  %v318 = vxor.u32 %v308, 2147483648
  %v319 = vsel %vm317, %v318, %v309
  %v320 = vsel %vm313, %v316, %v319
  %v321 = vsel %vm310, nan, %v320
  %s322 = scalar_lea.vmem %s1, 16
  %323 = vst [vmem:[%s322] sm:$0xff] %v321
  %s324 = scalar_lea.vmem %s0, 24
  %v325 = vld [vmem:[%s324] sm:$0xff]
  %v326 = vand.u32 2147483647, %v325
  %vm327 = vcmp.le.f32.partialorder %v326, 0.7853982
  %vm328 = vcmp.lt.s32.totalorder %v325, 0
  %v329 = vand.u32 %v325, 2139095040
  %v330 = vshrl.u32 %v329, 23
  %v331 = vsub.s32 %v330, 127
  %v332 = vand.u32 2147483647, %v325
  %v333 = vand.u32 %v332, 8388607
  %v334 = vor.u32 %v333, 8388608
  %v335 = vsub.s32 0, %v334
  %v336 = vadd.s32 %v331, 1
  %vm337 = vcmp.gt.s32.totalorder %v336, 0
  %v338 = vsel %vm337, %v336, 0
  %v339 = vshrl.u32 %v338, 5
  %v340 = vand.u32 %v338, 31
  %v341 = vsub.s32 32, %v340
  %v342 = vshrl.u32 683565275, %v341
  %v343 = vshll.u32 683565275, %v340
  %v344 = vshrl.u32 2475754826, %v341
  %v345 = vor.u32 %v343, %v344
  %v346 = vshll.u32 2475754826, %v340
  %v347 = vshrl.u32 2131351028, %v341
  %v348 = vor.u32 %v346, %v347
  %v349 = vshll.u32 2131351028, %v340
  %v350 = vshrl.u32 2102212464, %v341
  %v351 = vor.u32 %v349, %v350
  %v352 = vshll.u32 2102212464, %v340
  %v353 = vshrl.u32 920167782, %v341
  %v354 = vor.u32 %v352, %v353
  %v355 = vshll.u32 920167782, %v340
  %v356 = vshrl.u32 1326507024, %v341
  %v357 = vor.u32 %v355, %v356
  %vm358 = vcmp.lt.s32.totalorder %v339, 1
  %vm359 = vcmp.lt.s32.totalorder %v339, 2
  %vm360 = vcmp.lt.s32.totalorder %v339, 3
  %vm361 = vcmp.lt.s32.totalorder %v339, 4
  %v362 = vsel %vm358, %v342, %v345
  %v363 = vsel %vm361, %v351, 2102212464
  %v364 = vsel %vm360, %v348, %v363
  %v365 = vsel %vm359, %v362, %v364
  %v366 = vsel %vm358, %v345, %v348
  %v367 = vsel %vm361, %v354, 920167782
  %v368 = vsel %vm360, %v351, %v367
  %v369 = vsel %vm359, %v366, %v368
  %v370 = vsel %vm358, %v348, %v351
  %v371 = vsel %vm361, %v357, 1326507024
  %v372 = vsel %vm360, %v354, %v371
  %v373 = vsel %vm359, %v370, %v372
  %v374 = vshll.u32 %v334, 8
  %v375 = vmul.u32.u64.compose %v374, %v373
  %v376 = vextract.low.u32 %v375
  %v377 = vextract.high.u32 %v375
  %v378 = vmul.u32.u64.compose %v374, %v369
  %v379 = vextract.low.u32 %v378
  %v380 = vextract.high.u32 %v378
  %v381 = vmul.u32 %v374, %v365
  %v382 = vadd.s32 %v377, %v379
  %vm383 = vc.u32 %v377, %v379
  %v384 = vadd.s32 %v380, 1
  %v385 = vsel %vm383, %v384, %v380
  %v386 = vadd.s32 %v381, %v385
  %v387 = vadd.s32 %v386, 536870912
  %v388 = vshrl.u32 %v387, 30
  %v389 = vshll.u32 %v388, 30
  %v390 = vsub.s32 %v386, %v389
  %vm391 = vcmp.lt.s32.totalorder %v390, 0
  %v392 = vsub.s32 0, %v390
  %v393 = vsel %vm391, %v392, %v390
  %v394 = vclz %v393
  %v395 = vsub.s32 %v394, 2
  %vm396 = vcmp.gt.s32.totalorder 0, %v395
  %v397 = vsel %vm396, 0, %v395
  %v398 = vsub.s32 32, %v397
  %v399 = vshll.u32 %v390, %v397
  %v400 = vshrl.u32 %v382, %v398
  %v401 = vor.u32 %v399, %v400
  %v402 = vsub.s32 4294967266, %v397
  %v403 = vadd.s32 %v402, 127
  %v404 = vshll.u32 %v403, 23
  %v405 = vor.u32 4788187, %v404
  %v406 = vand.u32 2147483647, %v405
  %v408 = vcvt.s32.f32 %v401
  %v409 = vmul.f32 %v408, %v406
  %v410 = vxor.u32 %v409, 2147483648
  %v411 = vsel %vm328, %v410, %v409
  %v412 = vsub.s32 4, %v388
  %v413 = vsel %vm328, %v412, %v388
  %v414 = vsel %vm327, %v325, %v411
  %v415 = vsel %vm327, 0, %v413
  %v416 = vcosq.f32.pop %v414
  %v417 = vsinq.f32.pop %v414
  %vm418 = vweird.f32 %v325
  %v419 = vadd.s32 %v415, 3
  %v420 = vand.u32 %v419, 3
  %vm421 = vcmp.lt.s32.totalorder %v420, 2
  %vm422 = vcmp.eq.s32.totalorder %v420, 0
  %v423 = vxor.u32 %v417, 2147483648
  %v424 = vsel %vm422, %v416, %v423
  %vm425 = vcmp.eq.s32.totalorder %v420, 2
  %v426 = vxor.u32 %v416, 2147483648
  %v427 = vsel %vm425, %v426, %v417
  %v428 = vsel %vm421, %v424, %v427
  %v429 = vsel %vm418, nan, %v428
  %s430 = scalar_lea.vmem %s1, 24
  %431 = vst [vmem:[%s430] sm:$0xff] %v429
  %s432 = scalar_lea.vmem %s0, 32
  %v433 = vld [vmem:[%s432] sm:$0xff]
  %v434 = vand.u32 2147483647, %v433
  %vm435 = vcmp.le.f32.partialorder %v434, 0.7853982
  %vm436 = vcmp.lt.s32.totalorder %v433, 0
  %v437 = vand.u32 %v433, 2139095040
  %v438 = vshrl.u32 %v437, 23
  %v439 = vsub.s32 %v438, 127
  %v440 = vand.u32 2147483647, %v433
  %v441 = vand.u32 %v440, 8388607
  %v442 = vor.u32 %v441, 8388608
  %v443 = vsub.s32 0, %v442
  %v444 = vadd.s32 %v439, 1
  %vm445 = vcmp.gt.s32.totalorder %v444, 0
  %v446 = vsel %vm445, %v444, 0
  %v447 = vshrl.u32 %v446, 5
  %v448 = vand.u32 %v446, 31
  %v449 = vsub.s32 32, %v448
  %v450 = vshrl.u32 683565275, %v449
  %v451 = vshll.u32 683565275, %v448
  %v452 = vshrl.u32 2475754826, %v449
  %v453 = vor.u32 %v451, %v452
  %v454 = vshll.u32 2475754826, %v448
  %v455 = vshrl.u32 2131351028, %v449
  %v456 = vor.u32 %v454, %v455
  %v457 = vshll.u32 2131351028, %v448
  %v458 = vshrl.u32 2102212464, %v449
  %v459 = vor.u32 %v457, %v458
  %v460 = vshll.u32 2102212464, %v448
  %v461 = vshrl.u32 920167782, %v449
  %v462 = vor.u32 %v460, %v461
  %v463 = vshll.u32 920167782, %v448
  %v464 = vshrl.u32 1326507024, %v449
  %v465 = vor.u32 %v463, %v464
  %vm466 = vcmp.lt.s32.totalorder %v447, 1
  %vm467 = vcmp.lt.s32.totalorder %v447, 2
  %vm468 = vcmp.lt.s32.totalorder %v447, 3
  %vm469 = vcmp.lt.s32.totalorder %v447, 4
  %v470 = vsel %vm466, %v450, %v453
  %v471 = vsel %vm469, %v459, 2102212464
  %v472 = vsel %vm468, %v456, %v471
  %v473 = vsel %vm467, %v470, %v472
  %v474 = vsel %vm466, %v453, %v456
  %v475 = vsel %vm469, %v462, 920167782
  %v476 = vsel %vm468, %v459, %v475
  %v477 = vsel %vm467, %v474, %v476
  %v478 = vsel %vm466, %v456, %v459
  %v479 = vsel %vm469, %v465, 1326507024
  %v480 = vsel %vm468, %v462, %v479
  %v481 = vsel %vm467, %v478, %v480
  %v482 = vshll.u32 %v442, 8
  %v483 = vmul.u32.u64.compose %v482, %v481
  %v484 = vextract.low.u32 %v483
  %v485 = vextract.high.u32 %v483
  %v486 = vmul.u32.u64.compose %v482, %v477
  %v487 = vextract.low.u32 %v486
  %v488 = vextract.high.u32 %v486
  %v489 = vmul.u32 %v482, %v473
  %v490 = vadd.s32 %v485, %v487
  %vm491 = vc.u32 %v485, %v487
  %v492 = vadd.s32 %v488, 1
  %v493 = vsel %vm491, %v492, %v488
  %v494 = vadd.s32 %v489, %v493
  %v495 = vadd.s32 %v494, 536870912
  %v496 = vshrl.u32 %v495, 30
  %v497 = vshll.u32 %v496, 30
  %v498 = vsub.s32 %v494, %v497
  %vm499 = vcmp.lt.s32.totalorder %v498, 0
  %v500 = vsub.s32 0, %v498
  %v501 = vsel %vm499, %v500, %v498
  %v502 = vclz %v501
  %v503 = vsub.s32 %v502, 2
  %vm504 = vcmp.gt.s32.totalorder 0, %v503
  %v505 = vsel %vm504, 0, %v503
  %v506 = vsub.s32 32, %v505
  %v507 = vshll.u32 %v498, %v505
  %v508 = vshrl.u32 %v490, %v506
  %v509 = vor.u32 %v507, %v508
  %v510 = vsub.s32 4294967266, %v505
  %v511 = vadd.s32 %v510, 127
  %v512 = vshll.u32 %v511, 23
  %v513 = vor.u32 4788187, %v512
  %v514 = vand.u32 2147483647, %v513
  %v516 = vcvt.s32.f32 %v509
  %v517 = vmul.f32 %v516, %v514
  %v518 = vxor.u32 %v517, 2147483648
  %v519 = vsel %vm436, %v518, %v517
  %v520 = vsub.s32 4, %v496
  %v521 = vsel %vm436, %v520, %v496
  %v522 = vsel %vm435, %v433, %v519
  %v523 = vsel %vm435, 0, %v521
  %v524 = vcosq.f32.pop %v522
  %v525 = vsinq.f32.pop %v522
  %vm526 = vweird.f32 %v433
  %v527 = vadd.s32 %v523, 3
  %v528 = vand.u32 %v527, 3
  %vm529 = vcmp.lt.s32.totalorder %v528, 2
  %vm530 = vcmp.eq.s32.totalorder %v528, 0
  %v531 = vxor.u32 %v525, 2147483648
  %v532 = vsel %vm530, %v524, %v531
  %vm533 = vcmp.eq.s32.totalorder %v528, 2
  %v534 = vxor.u32 %v524, 2147483648
  %v535 = vsel %vm533, %v534, %v525
  %v536 = vsel %vm529, %v532, %v535
  %v537 = vsel %vm526, nan, %v536
  %s538 = scalar_lea.vmem %s1, 32
  %539 = vst [vmem:[%s538] sm:$0xff] %v537
  %s540 = scalar_lea.vmem %s0, 40
  %v541 = vld [vmem:[%s540] sm:$0xff]
  %v542 = vand.u32 2147483647, %v541
  %vm543 = vcmp.le.f32.partialorder %v542, 0.7853982
  %vm544 = vcmp.lt.s32.totalorder %v541, 0
  %v545 = vand.u32 %v541, 2139095040
  %v546 = vshrl.u32 %v545, 23
  %v547 = vsub.s32 %v546, 127
  %v548 = vand.u32 2147483647, %v541
  %v549 = vand.u32 %v548, 8388607
  %v550 = vor.u32 %v549, 8388608
  %v551 = vsub.s32 0, %v550
  %v552 = vadd.s32 %v547, 1
  %vm553 = vcmp.gt.s32.totalorder %v552, 0
  %v554 = vsel %vm553, %v552, 0
  %v555 = vshrl.u32 %v554, 5
  %v556 = vand.u32 %v554, 31
  %v557 = vsub.s32 32, %v556
  %v558 = vshrl.u32 683565275, %v557
  %v559 = vshll.u32 683565275, %v556
  %v560 = vshrl.u32 2475754826, %v557
  %v561 = vor.u32 %v559, %v560
  %v562 = vshll.u32 2475754826, %v556
  %v563 = vshrl.u32 2131351028, %v557
  %v564 = vor.u32 %v562, %v563
  %v565 = vshll.u32 2131351028, %v556
  %v566 = vshrl.u32 2102212464, %v557
  %v567 = vor.u32 %v565, %v566
  %v568 = vshll.u32 2102212464, %v556
  %v569 = vshrl.u32 920167782, %v557
  %v570 = vor.u32 %v568, %v569
  %v571 = vshll.u32 920167782, %v556
  %v572 = vshrl.u32 1326507024, %v557
  %v573 = vor.u32 %v571, %v572
  %vm574 = vcmp.lt.s32.totalorder %v555, 1
  %vm575 = vcmp.lt.s32.totalorder %v555, 2
  %vm576 = vcmp.lt.s32.totalorder %v555, 3
  %vm577 = vcmp.lt.s32.totalorder %v555, 4
  %v578 = vsel %vm574, %v558, %v561
  %v579 = vsel %vm577, %v567, 2102212464
  %v580 = vsel %vm576, %v564, %v579
  %v581 = vsel %vm575, %v578, %v580
  %v582 = vsel %vm574, %v561, %v564
  %v583 = vsel %vm577, %v570, 920167782
  %v584 = vsel %vm576, %v567, %v583
  %v585 = vsel %vm575, %v582, %v584
  %v586 = vsel %vm574, %v564, %v567
  %v587 = vsel %vm577, %v573, 1326507024
  %v588 = vsel %vm576, %v570, %v587
  %v589 = vsel %vm575, %v586, %v588
  %v590 = vshll.u32 %v550, 8
  %v591 = vmul.u32.u64.compose %v590, %v589
  %v592 = vextract.low.u32 %v591
  %v593 = vextract.high.u32 %v591
  %v594 = vmul.u32.u64.compose %v590, %v585
  %v595 = vextract.low.u32 %v594
  %v596 = vextract.high.u32 %v594
  %v597 = vmul.u32 %v590, %v581
  %v598 = vadd.s32 %v593, %v595
  %vm599 = vc.u32 %v593, %v595
  %v600 = vadd.s32 %v596, 1
  %v601 = vsel %vm599, %v600, %v596
  %v602 = vadd.s32 %v597, %v601
  %v603 = vadd.s32 %v602, 536870912
  %v604 = vshrl.u32 %v603, 30
  %v605 = vshll.u32 %v604, 30
  %v606 = vsub.s32 %v602, %v605
  %vm607 = vcmp.lt.s32.totalorder %v606, 0
  %v608 = vsub.s32 0, %v606
  %v609 = vsel %vm607, %v608, %v606
  %v610 = vclz %v609
  %v611 = vsub.s32 %v610, 2
  %vm612 = vcmp.gt.s32.totalorder 0, %v611
  %v613 = vsel %vm612, 0, %v611
  %v614 = vsub.s32 32, %v613
  %v615 = vshll.u32 %v606, %v613
  %v616 = vshrl.u32 %v598, %v614
  %v617 = vor.u32 %v615, %v616
  %v618 = vsub.s32 4294967266, %v613
  %v619 = vadd.s32 %v618, 127
  %v620 = vshll.u32 %v619, 23
  %v621 = vor.u32 4788187, %v620
  %v622 = vand.u32 2147483647, %v621
  %v624 = vcvt.s32.f32 %v617
  %v625 = vmul.f32 %v624, %v622
  %v626 = vxor.u32 %v625, 2147483648
  %v627 = vsel %vm544, %v626, %v625
  %v628 = vsub.s32 4, %v604
  %v629 = vsel %vm544, %v628, %v604
  %v630 = vsel %vm543, %v541, %v627
  %v631 = vsel %vm543, 0, %v629
  %v632 = vcosq.f32.pop %v630
  %v633 = vsinq.f32.pop %v630
  %vm634 = vweird.f32 %v541
  %v635 = vadd.s32 %v631, 3
  %v636 = vand.u32 %v635, 3
  %vm637 = vcmp.lt.s32.totalorder %v636, 2
  %vm638 = vcmp.eq.s32.totalorder %v636, 0
  %v639 = vxor.u32 %v633, 2147483648
  %v640 = vsel %vm638, %v632, %v639
  %vm641 = vcmp.eq.s32.totalorder %v636, 2
  %v642 = vxor.u32 %v632, 2147483648
  %v643 = vsel %vm641, %v642, %v633
  %v644 = vsel %vm637, %v640, %v643
  %v645 = vsel %vm634, nan, %v644
  %s646 = scalar_lea.vmem %s1, 40
  %647 = vst [vmem:[%s646] sm:$0xff] %v645
  %s648 = scalar_lea.vmem %s0, 48
  %v649 = vld [vmem:[%s648] sm:$0xff]
  %v650 = vand.u32 2147483647, %v649
  %vm651 = vcmp.le.f32.partialorder %v650, 0.7853982
  %vm652 = vcmp.lt.s32.totalorder %v649, 0
  %v653 = vand.u32 %v649, 2139095040
  %v654 = vshrl.u32 %v653, 23
  %v655 = vsub.s32 %v654, 127
  %v656 = vand.u32 2147483647, %v649
  %v657 = vand.u32 %v656, 8388607
  %v658 = vor.u32 %v657, 8388608
  %v659 = vsub.s32 0, %v658
  %v660 = vadd.s32 %v655, 1
  %vm661 = vcmp.gt.s32.totalorder %v660, 0
  %v662 = vsel %vm661, %v660, 0
  %v663 = vshrl.u32 %v662, 5
  %v664 = vand.u32 %v662, 31
  %v665 = vsub.s32 32, %v664
  %v666 = vshrl.u32 683565275, %v665
  %v667 = vshll.u32 683565275, %v664
  %v668 = vshrl.u32 2475754826, %v665
  %v669 = vor.u32 %v667, %v668
  %v670 = vshll.u32 2475754826, %v664
  %v671 = vshrl.u32 2131351028, %v665
  %v672 = vor.u32 %v670, %v671
  %v673 = vshll.u32 2131351028, %v664
  %v674 = vshrl.u32 2102212464, %v665
  %v675 = vor.u32 %v673, %v674
  %v676 = vshll.u32 2102212464, %v664
  %v677 = vshrl.u32 920167782, %v665
  %v678 = vor.u32 %v676, %v677
  %v679 = vshll.u32 920167782, %v664
  %v680 = vshrl.u32 1326507024, %v665
  %v681 = vor.u32 %v679, %v680
  %vm682 = vcmp.lt.s32.totalorder %v663, 1
  %vm683 = vcmp.lt.s32.totalorder %v663, 2
  %vm684 = vcmp.lt.s32.totalorder %v663, 3
  %vm685 = vcmp.lt.s32.totalorder %v663, 4
  %v686 = vsel %vm682, %v666, %v669
  %v687 = vsel %vm685, %v675, 2102212464
  %v688 = vsel %vm684, %v672, %v687
  %v689 = vsel %vm683, %v686, %v688
  %v690 = vsel %vm682, %v669, %v672
  %v691 = vsel %vm685, %v678, 920167782
  %v692 = vsel %vm684, %v675, %v691
  %v693 = vsel %vm683, %v690, %v692
  %v694 = vsel %vm682, %v672, %v675
  %v695 = vsel %vm685, %v681, 1326507024
  %v696 = vsel %vm684, %v678, %v695
  %v697 = vsel %vm683, %v694, %v696
  %v698 = vshll.u32 %v658, 8
  %v699 = vmul.u32.u64.compose %v698, %v697
  %v700 = vextract.low.u32 %v699
  %v701 = vextract.high.u32 %v699
  %v702 = vmul.u32.u64.compose %v698, %v693
  %v703 = vextract.low.u32 %v702
  %v704 = vextract.high.u32 %v702
  %v705 = vmul.u32 %v698, %v689
  %v706 = vadd.s32 %v701, %v703
  %vm707 = vc.u32 %v701, %v703
  %v708 = vadd.s32 %v704, 1
  %v709 = vsel %vm707, %v708, %v704
  %v710 = vadd.s32 %v705, %v709
  %v711 = vadd.s32 %v710, 536870912
  %v712 = vshrl.u32 %v711, 30
  %v713 = vshll.u32 %v712, 30
  %v714 = vsub.s32 %v710, %v713
  %vm715 = vcmp.lt.s32.totalorder %v714, 0
  %v716 = vsub.s32 0, %v714
  %v717 = vsel %vm715, %v716, %v714
  %v718 = vclz %v717
  %v719 = vsub.s32 %v718, 2
  %vm720 = vcmp.gt.s32.totalorder 0, %v719
  %v721 = vsel %vm720, 0, %v719
  %v722 = vsub.s32 32, %v721
  %v723 = vshll.u32 %v714, %v721
  %v724 = vshrl.u32 %v706, %v722
  %v725 = vor.u32 %v723, %v724
  %v726 = vsub.s32 4294967266, %v721
  %v727 = vadd.s32 %v726, 127
  %v728 = vshll.u32 %v727, 23
  %v729 = vor.u32 4788187, %v728
  %v730 = vand.u32 2147483647, %v729
  %v732 = vcvt.s32.f32 %v725
  %v733 = vmul.f32 %v732, %v730
  %v734 = vxor.u32 %v733, 2147483648
  %v735 = vsel %vm652, %v734, %v733
  %v736 = vsub.s32 4, %v712
  %v737 = vsel %vm652, %v736, %v712
  %v738 = vsel %vm651, %v649, %v735
  %v739 = vsel %vm651, 0, %v737
  %v740 = vcosq.f32.pop %v738
  %v741 = vsinq.f32.pop %v738
  %vm742 = vweird.f32 %v649
  %v743 = vadd.s32 %v739, 3
  %v744 = vand.u32 %v743, 3
  %vm745 = vcmp.lt.s32.totalorder %v744, 2
  %vm746 = vcmp.eq.s32.totalorder %v744, 0
  %v747 = vxor.u32 %v741, 2147483648
  %v748 = vsel %vm746, %v740, %v747
  %vm749 = vcmp.eq.s32.totalorder %v744, 2
  %v750 = vxor.u32 %v740, 2147483648
  %v751 = vsel %vm749, %v750, %v741
  %v752 = vsel %vm745, %v748, %v751
  %v753 = vsel %vm742, nan, %v752
  %s754 = scalar_lea.vmem %s1, 48
  %755 = vst [vmem:[%s754] sm:$0xff] %v753
  %s756 = scalar_lea.vmem %s0, 56
  %v757 = vld [vmem:[%s756] sm:$0xff]
  %v758 = vand.u32 2147483647, %v757
  %vm759 = vcmp.le.f32.partialorder %v758, 0.7853982
  %vm760 = vcmp.lt.s32.totalorder %v757, 0
  %v761 = vand.u32 %v757, 2139095040
  %v762 = vshrl.u32 %v761, 23
  %v763 = vsub.s32 %v762, 127
  %v764 = vand.u32 2147483647, %v757
  %v765 = vand.u32 %v764, 8388607
  %v766 = vor.u32 %v765, 8388608
  %v767 = vsub.s32 0, %v766
  %v768 = vadd.s32 %v763, 1
  %vm769 = vcmp.gt.s32.totalorder %v768, 0
  %v770 = vsel %vm769, %v768, 0
  %v771 = vshrl.u32 %v770, 5
  %v772 = vand.u32 %v770, 31
  %v773 = vsub.s32 32, %v772
  %v774 = vshrl.u32 683565275, %v773
  %v775 = vshll.u32 683565275, %v772
  %v776 = vshrl.u32 2475754826, %v773
  %v777 = vor.u32 %v775, %v776
  %v778 = vshll.u32 2475754826, %v772
  %v779 = vshrl.u32 2131351028, %v773
  %v780 = vor.u32 %v778, %v779
  %v781 = vshll.u32 2131351028, %v772
  %v782 = vshrl.u32 2102212464, %v773
  %v783 = vor.u32 %v781, %v782
  %v784 = vshll.u32 2102212464, %v772
  %v785 = vshrl.u32 920167782, %v773
  %v786 = vor.u32 %v784, %v785
  %v787 = vshll.u32 920167782, %v772
  %v788 = vshrl.u32 1326507024, %v773
  %v789 = vor.u32 %v787, %v788
  %vm790 = vcmp.lt.s32.totalorder %v771, 1
  %vm791 = vcmp.lt.s32.totalorder %v771, 2
  %vm792 = vcmp.lt.s32.totalorder %v771, 3
  %vm793 = vcmp.lt.s32.totalorder %v771, 4
  %v794 = vsel %vm790, %v774, %v777
  %v795 = vsel %vm793, %v783, 2102212464
  %v796 = vsel %vm792, %v780, %v795
  %v797 = vsel %vm791, %v794, %v796
  %v798 = vsel %vm790, %v777, %v780
  %v799 = vsel %vm793, %v786, 920167782
  %v800 = vsel %vm792, %v783, %v799
  %v801 = vsel %vm791, %v798, %v800
  %v802 = vsel %vm790, %v780, %v783
  %v803 = vsel %vm793, %v789, 1326507024
  %v804 = vsel %vm792, %v786, %v803
  %v805 = vsel %vm791, %v802, %v804
  %v806 = vshll.u32 %v766, 8
  %v807 = vmul.u32.u64.compose %v806, %v805
  %v808 = vextract.low.u32 %v807
  %v809 = vextract.high.u32 %v807
  %v810 = vmul.u32.u64.compose %v806, %v801
  %v811 = vextract.low.u32 %v810
  %v812 = vextract.high.u32 %v810
  %v813 = vmul.u32 %v806, %v797
  %v814 = vadd.s32 %v809, %v811
  %vm815 = vc.u32 %v809, %v811
  %v816 = vadd.s32 %v812, 1
  %v817 = vsel %vm815, %v816, %v812
  %v818 = vadd.s32 %v813, %v817
  %v819 = vadd.s32 %v818, 536870912
  %v820 = vshrl.u32 %v819, 30
  %v821 = vshll.u32 %v820, 30
  %v822 = vsub.s32 %v818, %v821
  %vm823 = vcmp.lt.s32.totalorder %v822, 0
  %v824 = vsub.s32 0, %v822
  %v825 = vsel %vm823, %v824, %v822
  %v826 = vclz %v825
  %v827 = vsub.s32 %v826, 2
  %vm828 = vcmp.gt.s32.totalorder 0, %v827
  %v829 = vsel %vm828, 0, %v827
  %v830 = vsub.s32 32, %v829
  %v831 = vshll.u32 %v822, %v829
  %v832 = vshrl.u32 %v814, %v830
  %v833 = vor.u32 %v831, %v832
  %v834 = vsub.s32 4294967266, %v829
  %v835 = vadd.s32 %v834, 127
  %v836 = vshll.u32 %v835, 23
  %v837 = vor.u32 4788187, %v836
  %v838 = vand.u32 2147483647, %v837
  %v840 = vcvt.s32.f32 %v833
  %v841 = vmul.f32 %v840, %v838
  %v842 = vxor.u32 %v841, 2147483648
  %v843 = vsel %vm760, %v842, %v841
  %v844 = vsub.s32 4, %v820
  %v845 = vsel %vm760, %v844, %v820
  %v846 = vsel %vm759, %v757, %v843
  %v847 = vsel %vm759, 0, %v845
  %v848 = vcosq.f32.pop %v846
  %v849 = vsinq.f32.pop %v846
  %vm850 = vweird.f32 %v757
  %v851 = vadd.s32 %v847, 3
  %v852 = vand.u32 %v851, 3
  %vm853 = vcmp.lt.s32.totalorder %v852, 2
  %vm854 = vcmp.eq.s32.totalorder %v852, 0
  %v855 = vxor.u32 %v849, 2147483648
  %v856 = vsel %vm854, %v848, %v855
  %vm857 = vcmp.eq.s32.totalorder %v852, 2
  %v858 = vxor.u32 %v848, 2147483648
  %v859 = vsel %vm857, %v858, %v849
  %v860 = vsel %vm853, %v856, %v859
  %v861 = vsel %vm850, nan, %v860
  %s862 = scalar_lea.vmem %s1, 56
  %863 = vst [vmem:[%s862] sm:$0xff] %v861
  %s864 = scalar_lea.vmem %s0, 64
  %v865 = vld [vmem:[%s864] sm:$0xff]
  %v866 = vand.u32 2147483647, %v865
  %vm867 = vcmp.le.f32.partialorder %v866, 0.7853982
  %vm868 = vcmp.lt.s32.totalorder %v865, 0
  %v869 = vand.u32 %v865, 2139095040
  %v870 = vshrl.u32 %v869, 23
  %v871 = vsub.s32 %v870, 127
  %v872 = vand.u32 2147483647, %v865
  %v873 = vand.u32 %v872, 8388607
  %v874 = vor.u32 %v873, 8388608
  %v875 = vsub.s32 0, %v874
  %v876 = vadd.s32 %v871, 1
  %vm877 = vcmp.gt.s32.totalorder %v876, 0
  %v878 = vsel %vm877, %v876, 0
  %v879 = vshrl.u32 %v878, 5
  %v880 = vand.u32 %v878, 31
  %v881 = vsub.s32 32, %v880
  %v882 = vshrl.u32 683565275, %v881
  %v883 = vshll.u32 683565275, %v880
  %v884 = vshrl.u32 2475754826, %v881
  %v885 = vor.u32 %v883, %v884
  %v886 = vshll.u32 2475754826, %v880
  %v887 = vshrl.u32 2131351028, %v881
  %v888 = vor.u32 %v886, %v887
  %v889 = vshll.u32 2131351028, %v880
  %v890 = vshrl.u32 2102212464, %v881
  %v891 = vor.u32 %v889, %v890
  %v892 = vshll.u32 2102212464, %v880
  %v893 = vshrl.u32 920167782, %v881
  %v894 = vor.u32 %v892, %v893
  %v895 = vshll.u32 920167782, %v880
  %v896 = vshrl.u32 1326507024, %v881
  %v897 = vor.u32 %v895, %v896
  %vm898 = vcmp.lt.s32.totalorder %v879, 1
  %vm899 = vcmp.lt.s32.totalorder %v879, 2
  %vm900 = vcmp.lt.s32.totalorder %v879, 3
  %vm901 = vcmp.lt.s32.totalorder %v879, 4
  %v902 = vsel %vm898, %v882, %v885
  %v903 = vsel %vm901, %v891, 2102212464
  %v904 = vsel %vm900, %v888, %v903
  %v905 = vsel %vm899, %v902, %v904
  %v906 = vsel %vm898, %v885, %v888
  %v907 = vsel %vm901, %v894, 920167782
  %v908 = vsel %vm900, %v891, %v907
  %v909 = vsel %vm899, %v906, %v908
  %v910 = vsel %vm898, %v888, %v891
  %v911 = vsel %vm901, %v897, 1326507024
  %v912 = vsel %vm900, %v894, %v911
  %v913 = vsel %vm899, %v910, %v912
  %v914 = vshll.u32 %v874, 8
  %v915 = vmul.u32.u64.compose %v914, %v913
  %v916 = vextract.low.u32 %v915
  %v917 = vextract.high.u32 %v915
  %v918 = vmul.u32.u64.compose %v914, %v909
  %v919 = vextract.low.u32 %v918
  %v920 = vextract.high.u32 %v918
  %v921 = vmul.u32 %v914, %v905
  %v922 = vadd.s32 %v917, %v919
  %vm923 = vc.u32 %v917, %v919
  %v924 = vadd.s32 %v920, 1
  %v925 = vsel %vm923, %v924, %v920
  %v926 = vadd.s32 %v921, %v925
  %v927 = vadd.s32 %v926, 536870912
  %v928 = vshrl.u32 %v927, 30
  %v929 = vshll.u32 %v928, 30
  %v930 = vsub.s32 %v926, %v929
  %vm931 = vcmp.lt.s32.totalorder %v930, 0
  %v932 = vsub.s32 0, %v930
  %v933 = vsel %vm931, %v932, %v930
  %v934 = vclz %v933
  %v935 = vsub.s32 %v934, 2
  %vm936 = vcmp.gt.s32.totalorder 0, %v935
  %v937 = vsel %vm936, 0, %v935
  %v938 = vsub.s32 32, %v937
  %v939 = vshll.u32 %v930, %v937
  %v940 = vshrl.u32 %v922, %v938
  %v941 = vor.u32 %v939, %v940
  %v942 = vsub.s32 4294967266, %v937
  %v943 = vadd.s32 %v942, 127
  %v944 = vshll.u32 %v943, 23
  %v945 = vor.u32 4788187, %v944
  %v946 = vand.u32 2147483647, %v945
  %v948 = vcvt.s32.f32 %v941
  %v949 = vmul.f32 %v948, %v946
  %v950 = vxor.u32 %v949, 2147483648
  %v951 = vsel %vm868, %v950, %v949
  %v952 = vsub.s32 4, %v928
  %v953 = vsel %vm868, %v952, %v928
  %v954 = vsel %vm867, %v865, %v951
  %v955 = vsel %vm867, 0, %v953
  %v956 = vcosq.f32.pop %v954
  %v957 = vsinq.f32.pop %v954
  %vm958 = vweird.f32 %v865
  %v959 = vadd.s32 %v955, 3
  %v960 = vand.u32 %v959, 3
  %vm961 = vcmp.lt.s32.totalorder %v960, 2
  %vm962 = vcmp.eq.s32.totalorder %v960, 0
  %v963 = vxor.u32 %v957, 2147483648
  %v964 = vsel %vm962, %v956, %v963
  %vm965 = vcmp.eq.s32.totalorder %v960, 2
  %v966 = vxor.u32 %v956, 2147483648
  %v967 = vsel %vm965, %v966, %v957
  %v968 = vsel %vm961, %v964, %v967
  %v969 = vsel %vm958, nan, %v968
  %s970 = scalar_lea.vmem %s1, 64
  %971 = vst [vmem:[%s970] sm:$0xff] %v969

// kernel: patch_embedding_forward.1
$region0: #{patch_embedding_forward.1}
  #allocation0 [shape = 'u32[]', space=smem, size = 0x4, offset = 0x4, fixed_abs, tag = 'smem constant byte address 0x4 - core index']
  #allocation1 [shape = 'u32[144,128]{1,0:T(1,128)}', space=vmem, size = 0x12000, scoped, tag = 'internal scratch']
  %s0 = inlined_call_operand.vmem [shape: bf16[2,64,48], index: 0, kind: input, shape index: {}]
  %s1 = inlined_call_operand.vmem [shape: bf16[48,128], index: 1, kind: input, shape index: {}]
  %s2 = inlined_call_operand.vmem [shape: f32[64,128], index: 2, kind: input, shape index: {}]
  %s3 = inlined_call_operand.vmem [shape: f32[2,64,128], index: 3, kind: output, shape index: {}]
  %s4 = sld [smem:[#allocation0]]
  $region45: #{patch_embedding_forward.1} parent=0
    _
  %s6 = ssub.s32 1, %s4
  %s7 = scalar_select 0, %s6, %s4
  loop: start=0, step=1, limit=4
  $region2: #{patch_embedding_forward.1} parent=0 // loop_pre_header
    _
  $region3: #{patch_embedding_forward.1} parent=0 // loop_header
    %s9 = sphi 0, %s13
    %p10 = scmp.ge.s32.totalorder %s9, 4
    %s19 = sphi 0, %s21
    %s22 = sphi 0, %s19
    %s23 = sphi 0, %s22
    %s39 = sphi 0, %s23
    %s43 = sphi 0, %s43
    %s45 = sphi 0, %s43
    %s46 = sphi 0, %s45
    %s60 = sphi 0, %s46
    %s64 = sphi 0, %s64
    %s66 = sphi 0, %s64
    %s67 = sphi 0, %s66
    %s81 = sphi 0, %s67
    %s87 = sphi 0, %s89
    %s90 = sphi 0, %s87
    %s91 = sphi 0, %s90
    %s107 = sphi 0, %s91
  $region4: #{patch_embedding_forward.1} parent=0 // loop_header_branch
    %12 = sbr.rel (%p10) target = $region8
  $region5: #{patch_embedding_forward.1} parent=0 // loop_body
    %s14 = ssub.s32 %s9, 1
    %s15 = ssub.s32 %s9, 2
    %s16 = sadd.s32 %s9, 1
    %s17 = ssub.s32 %s9, %s16
    %p18 = scmp.eq.s32.totalorder %s17, 0
    %s20 = sadd.s32 %s19, 1
    %s21 = scalar_select %p18, %s19, %s20
    %p24 = pneg %p18
    %p25 = scmp.eq.s32.totalorder %s9, 1
    %p26 = por %p24, %p25
    %p27 = scmp.ne.s32.totalorder %s19, %s22
    %p28 = scmp.eq.s32.totalorder %s9, 0
    %p29 = por %p27, %p28
    %p30 = scmp.ne.s32.totalorder %s19, %s22
    %p31 = scmp.eq.s32.totalorder %s14, 1
    %p32 = por %p30, %p31
    %p33 = scmp.ne.s32.totalorder %s22, %s23
    %p34 = scmp.eq.s32.totalorder %s14, 0
    %p35 = por %p33, %p34
    %p36 = scmp.ne.s32.totalorder %s22, %s23
    %p37 = scmp.eq.s32.totalorder %s15, 1
    %p38 = por %p36, %p37
    %p40 = scmp.ne.s32.totalorder %s23, %s39
    %p41 = scmp.eq.s32.totalorder %s15, 0
    %p42 = por %p40, %p41
    %s44 = sadd.s32 %s43, 1
    %p47 = scmp.eq.s32.totalorder %s9, 1
    %p48 = scmp.ne.s32.totalorder %s43, %s45
    %p49 = scmp.eq.s32.totalorder %s9, 0
    %p50 = por %p48, %p49
    %p51 = scmp.ne.s32.totalorder %s43, %s45
    %p52 = scmp.eq.s32.totalorder %s14, 1
    %p53 = por %p51, %p52
    %p54 = scmp.ne.s32.totalorder %s45, %s46
    %p55 = scmp.eq.s32.totalorder %s14, 0
    %p56 = por %p54, %p55
    %p57 = scmp.ne.s32.totalorder %s45, %s46
    %p58 = scmp.eq.s32.totalorder %s15, 1
    %p59 = por %p57, %p58
    %p61 = scmp.ne.s32.totalorder %s46, %s60
    %p62 = scmp.eq.s32.totalorder %s15, 0
    %p63 = por %p61, %p62
    %s65 = sadd.s32 %s64, 1
    %p68 = scmp.eq.s32.totalorder %s9, 1
    %p69 = scmp.ne.s32.totalorder %s64, %s66
    %p70 = scmp.eq.s32.totalorder %s9, 0
    %p71 = por %p69, %p70
    %p72 = scmp.ne.s32.totalorder %s64, %s66
    %p73 = scmp.eq.s32.totalorder %s14, 1
    %p74 = por %p72, %p73
    %p75 = scmp.ne.s32.totalorder %s66, %s67
    %p76 = scmp.eq.s32.totalorder %s14, 0
    %p77 = por %p75, %p76
    %p78 = scmp.ne.s32.totalorder %s66, %s67
    %p79 = scmp.eq.s32.totalorder %s15, 1
    %p80 = por %p78, %p79
    %p82 = scmp.ne.s32.totalorder %s67, %s81
    %p83 = scmp.eq.s32.totalorder %s15, 0
    %p84 = por %p82, %p83
    %s85 = ssub.s32 %s9, %s16
    %p86 = scmp.eq.s32.totalorder %s85, 0
    %s88 = sadd.s32 %s87, 1
    %s89 = scalar_select %p86, %s87, %s88
    %p92 = pneg %p86
    %p93 = scmp.eq.s32.totalorder %s9, 1
    %p94 = por %p92, %p93
    %p95 = scmp.ne.s32.totalorder %s87, %s90
    %p96 = scmp.eq.s32.totalorder %s9, 0
    %p97 = por %p95, %p96
    %p98 = scmp.ne.s32.totalorder %s87, %s90
    %p99 = scmp.eq.s32.totalorder %s14, 1
    %p100 = por %p98, %p99
    %p101 = scmp.ne.s32.totalorder %s90, %s91
    %p102 = scmp.eq.s32.totalorder %s14, 0
    %p103 = por %p101, %p102
    %p104 = scmp.ne.s32.totalorder %s90, %s91
    %p105 = scmp.eq.s32.totalorder %s15, 1
    %p106 = por %p104, %p105
    %p108 = scmp.ne.s32.totalorder %s91, %s107
    %p109 = scmp.eq.s32.totalorder %s15, 0
    %p110 = por %p108, %p109
    %p111 = scmp.le.s32.totalorder 1, %s9
    %p112 = scmp.lt.s32.totalorder %s9, 3
    %p113 = pnand %p111, %p112
    %p114 = pneg %p113
    // Predicated region
    $region9: #{patch_embedding_forward.1} parent=5 // pred_check
      _
    $region10: #{patch_embedding_forward.1} parent=5 // pred_check_branch
      %116 = sbr.rel (%p113) target = $region12
    $region11: #{patch_embedding_forward.1} parent=5 // pred_region
      %s117 = ssub.s32 %s9, 1
      // Predicated region
      $region13: #{patch_embedding_forward.1} parent=11 // pred_check
        %p118 = pneg %p56
      $region14: #{patch_embedding_forward.1} parent=11 // pred_check_branch
        %120 = sbr.rel (%p118) target = $region16
      $region15: #{patch_embedding_forward.1} parent=11 // pred_region
        _
      $region16: #{patch_embedding_forward.1} parent=11 // pred_fallthru
        _
      // Predicated region
      $region17: #{patch_embedding_forward.1} parent=11 // pred_check
        %p121 = pneg %p77
      $region18: #{patch_embedding_forward.1} parent=11 // pred_check_branch
        %123 = sbr.rel (%p121) target = $region20
      $region19: #{patch_embedding_forward.1} parent=11 // pred_region
        _
      $region20: #{patch_embedding_forward.1} parent=11 // pred_fallthru
        _
    $region12: #{patch_embedding_forward.1} parent=5 // pred_fallthru
      _
    %p124 = scmp.lt.s32.totalorder %s9, 2
    // Predicated region
    $region21: #{patch_embedding_forward.1} parent=5 // pred_check
      %p125 = pneg %p124
    $region22: #{patch_embedding_forward.1} parent=5 // pred_check_branch
      %127 = sbr.rel (%p125) target = $region24
    $region23: #{patch_embedding_forward.1} parent=5 // pred_region
      // Predicated region
      $region25: #{patch_embedding_forward.1} parent=23 // pred_check
        %p128 = pneg %p29
      $region26: #{patch_embedding_forward.1} parent=23 // pred_check_branch
        %130 = sbr.rel (%p128) target = $region28
      $region27: #{patch_embedding_forward.1} parent=23 // pred_region
        %p131 = scmp.lt.s32.totalorder %s9, 1
        %s132 = scalar_select %p131, %s9, 1
        %s133 = smul.addr %s132, 8
        %s134 = smul.addr %s133, 4
        %s135 = scalar_lea.vmem %s0, %s134
      $region28: #{patch_embedding_forward.1} parent=23 // pred_fallthru
        _
    $region24: #{patch_embedding_forward.1} parent=5 // pred_fallthru
      _
    %p136 = scmp.le.s32.totalorder 1, %s9
    %p137 = scmp.lt.s32.totalorder %s9, 3
    %p138 = pnand %p136, %p137
    %p139 = pneg %p138
    // Predicated region
    $region29: #{patch_embedding_forward.1} parent=5 // pred_check
      _
    $region30: #{patch_embedding_forward.1} parent=5 // pred_check_branch
      %141 = sbr.rel (%p138) target = $region32
    $region31: #{patch_embedding_forward.1} parent=5 // pred_region
      %s142 = ssub.s32 %s9, 1
      %p143 = scmp.lt.s32.totalorder %s14, 1
      %s144 = scalar_select %p143, %s14, 1
      %s145 = smul.addr %s144, 8
      %s146 = smul.addr %s145, 4
      %s147 = scalar_lea.vmem %s0, %s146
      %p148 = pneg %p35
      %p149 = pneg %p32
      %p150 = pneg %p56
      %p151 = pneg %p53
      %p152 = pneg %p77
      %p153 = pneg %p74
      %p154 = pneg %p103
      %p155 = pneg %p100
      %p156 = scmp.lt.s32.totalorder %s14, 1
      %s157 = scalar_select %p156, %s14, 1
      %s158 = smul.addr %s157, 8
      %s159 = smul.addr %s158, 8
      %s160 = scalar_lea.vmem %s3, %s159
      %p161 = scmp.lt.s32.totalorder %s14, 1
      %s162 = scalar_select %p161, %s14, 1
      %s163 = smul.addr %s162, 8
      %s164 = smul.addr %s163, 4
      %s165 = scalar_lea.vmem %s0, %s164
      %p166 = scmp.lt.s32.totalorder %s14, 1
      %s167 = scalar_select %p166, %s14, 1
      %s168 = smul.addr %s167, 8
      %s169 = smul.addr %s168, 8
      %s170 = scalar_lea.vmem %s3, %s169
      %v172 = vld [vmem:[%s1] sm:$0xf]
      %v173 = vld [vmem:[%s1 + $0x4] sm:$0xf]
      %v174 = vld [vmem:[%s1 + $0x8] sm:$0xf]
      %v175 = vld [vmem:[%s1 + $0xc] sm:$0xf]
      %v176 = vld [vmem:[%s1 + $0x10] sm:$0xf]
      %v177 = vld [vmem:[%s1 + $0x14] sm:$0xf]
      %v178 = vld [vmem:[%s2] sm:$0xff]
      %v179 = vld [vmem:[%s2 + $0x8] sm:$0xff]
      %v180 = vld [vmem:[%s2 + $0x10] sm:$0xff]
      %v181 = vld [vmem:[%s2 + $0x18] sm:$0xff]
      %v182 = vld [vmem:[%s2 + $0x20] sm:$0xff]
      %v183 = vld [vmem:[%s2 + $0x28] sm:$0xff]
      %v184 = vld [vmem:[%s2 + $0x30] sm:$0xff]
      %v185 = vld [vmem:[%s2 + $0x38] sm:$0xff]
      %v186 = vld [vmem:[%s165] sm:$0xf]
      %v187 = vld [vmem:[%s165 + $0x4] sm:$0xf]
      %v188 = vld [vmem:[%s165 + $0x8] sm:$0xf]
      %v189 = vld [vmem:[%s165 + $0xc] sm:$0xf]
      %v190 = vld [vmem:[%s165 + $0x10] sm:$0xf]
      %v191 = vld [vmem:[%s165 + $0x14] sm:$0xf]
      %v192 = vld [vmem:[%s165 + $0x18] sm:$0xf]
      %v193 = vld [vmem:[%s165 + $0x1c] sm:$0xf]
      %v202 = vunpack.c.l.b16 %v186
      %v203 = vunpack.c.l.b16 %v187
      %v204 = vunpack.c.l.b16 %v188
      %v205 = vunpack.c.l.b16 %v189
      %v206 = vunpack.c.l.b16 %v190
      %v207 = vunpack.c.l.b16 %v191
      %v208 = vunpack.c.l.b16 %v192
      %v209 = vunpack.c.l.b16 %v193
      %v210 = vpack.c.b16 %v203, %v202
      %v211 = vpack.c.b16 %v205, %v204
      %v212 = vpack.c.b16 %v207, %v206
      %v213 = vpack.c.b16 %v209, %v208
      %v220 = vunpack.c.l.b16 %v172
      %v221 = vunpack.c.l.b16 %v173
      %v222 = vunpack.c.l.b16 %v174
      %v223 = vunpack.c.l.b16 %v175
      %v224 = vunpack.c.l.b16 %v176
      %v225 = vunpack.c.l.b16 %v177
      %v226 = vpack.c.b16 %v221, %v220
      %v227 = vpack.c.b16 %v223, %v222
      %v228 = vpack.c.b16 %v225, %v224
      %vm232 = vcmask 392192
      %v234 = vsel %vm232, %v210, 0
      %v237 = vsel %vm232, %v211, 0
      %v240 = vsel %vm232, %v212, 0
      %v243 = vsel %vm232, %v213, 0
      %245 = vmatprep.subr.bf16.mxu0 0
      %246 = vmatpush1.bf16.msra.mxu0 %v226
      %247 = vmatprep.subr.bf16.mxu0 0
      %248 = vmatpush1.bf16.msra.mxu0 %v227
      %249 = vmatprep.subr.bf16.mxu0 0
      %250 = vmatpush1.bf16.msra.mxu0 %v228
      %251 = vmatprep.subr.bf16.mxu0 0
      %252 = vmatpush1.bf16.msra.mxu0 0
      %253 = vmatprep.subr.bf16.mxu0 0
      %254 = vmatpush1.bf16.msra.mxu0 0
      %255 = vmatprep.subr.bf16.mxu0 0
      %256 = vmatpush1.bf16.msra.mxu0 0
      %257 = vmatprep.subr.bf16.mxu0 0
      %258 = vmatpush1.bf16.msra.mxu0 0
      %259 = vmatprep.subr.bf16.mxu0 0
      %260 = vmatpush1.bf16.msra.mxu0 0
      %261 = vmatprep.subr.bf16.mxu0 0
      %262 = vmatpush1.bf16.msra.mxu0 0
      %263 = vmatprep.subr.bf16.mxu0 0
      %264 = vmatpush1.bf16.msra.mxu0 0
      %265 = vmatprep.subr.bf16.mxu0 0
      %266 = vmatpush1.bf16.msra.mxu0 0
      %267 = vmatprep.subr.bf16.mxu0 0
      %268 = vmatpush1.bf16.msra.mxu0 0
      %269 = vmatprep.subr.bf16.mxu0 0
      %270 = vmatpush1.bf16.msra.mxu0 0
      %271 = vmatprep.subr.bf16.mxu0 0
      %272 = vmatpush1.bf16.msra.mxu0 0
      %273 = vmatprep.subr.bf16.mxu0 0
      %274 = vmatpush1.bf16.msra.mxu0 0
      %275 = vmatprep.subr.bf16.mxu0 0
      %276 = vmatpush1.bf16.msra.mxu0 0
      %277 = vmatprep.mubr.bf16.mxu0 0
      %278 = vmatmul.mubr.bf16.gmra.mrb[0].mxu0 %v234
      %v279 = vpop.f32.mrb[0].mxu0
      %v280 = vadd.f32 %v178, %v279
      %v281 = vpop.f32.mrb[0].mxu0
      %v282 = vpop.f32.mrb[0].mxu0
      %v283 = vadd.f32 %v179, %v282
      %v284 = vpop.f32.mrb[0].mxu0
      %285 = vmatprep.mubr.bf16.mxu0 0
      %286 = vmatmul.mubr.bf16.gmra.mrb[0].mxu0 %v237
      %v287 = vpop.f32.mrb[0].mxu0
      %v288 = vadd.f32 %v180, %v287
      %v289 = vpop.f32.mrb[0].mxu0
      %v290 = vpop.f32.mrb[0].mxu0
      %v291 = vadd.f32 %v181, %v290
      %v292 = vpop.f32.mrb[0].mxu0
      %293 = vmatprep.mubr.bf16.mxu0 0
      %294 = vmatmul.mubr.bf16.gmra.mrb[0].mxu0 %v240
      %v295 = vpop.f32.mrb[0].mxu0
      %v296 = vadd.f32 %v182, %v295
      %v297 = vpop.f32.mrb[0].mxu0
      %v298 = vpop.f32.mrb[0].mxu0
      %v299 = vadd.f32 %v183, %v298
      %v300 = vpop.f32.mrb[0].mxu0
      %301 = vmatprep.mubr.bf16.mxu0 0
      %302 = vmatmul.mubr.bf16.gmra.mrb[0].mxu0 %v243
      %v303 = vpop.f32.mrb[0].mxu0
      %v304 = vadd.f32 %v184, %v303
      %v305 = vpop.f32.mrb[0].mxu0
      %v306 = vpop.f32.mrb[0].mxu0
      %v307 = vadd.f32 %v185, %v306
      %v308 = vpop.f32.mrb[0].mxu0
      %309 = vdwg.mxu0
      %310 = vst [vmem:[%s170] sm:$0xff] %v280
      %311 = vst [vmem:[%s170 + $0x8] sm:$0xff] %v283
      %312 = vst [vmem:[%s170 + $0x10] sm:$0xff] %v288
      %313 = vst [vmem:[%s170 + $0x18] sm:$0xff] %v291
      %314 = vst [vmem:[%s170 + $0x20] sm:$0xff] %v296
      %315 = vst [vmem:[%s170 + $0x28] sm:$0xff] %v299
      %316 = vst [vmem:[%s170 + $0x30] sm:$0xff] %v304
      %317 = vst [vmem:[%s170 + $0x38] sm:$0xff] %v307
      %p318 = scmp.lt.s32.totalorder %s14, 1
      %s319 = scalar_select %p318, %s14, 1
      %s320 = smul.addr %s319, 8
      %s321 = smul.addr %s320, 8
      %s322 = scalar_lea.vmem %s3, %s321
      // Predicated region
      $region33: #{patch_embedding_forward.1} parent=31 // pred_check
        %p323 = pneg %p100
      $region34: #{patch_embedding_forward.1} parent=31 // pred_check_branch
        %325 = sbr.rel (%p323) target = $region36
      $region35: #{patch_embedding_forward.1} parent=31 // pred_region
        _
      $region36: #{patch_embedding_forward.1} parent=31 // pred_fallthru
        _
    $region32: #{patch_embedding_forward.1} parent=5 // pred_fallthru
      _
    %p326 = scmp.le.s32.totalorder 2, %s9
    // Predicated region
    $region37: #{patch_embedding_forward.1} parent=5 // pred_check
      %p327 = pneg %p326
    $region38: #{patch_embedding_forward.1} parent=5 // pred_check_branch
      %329 = sbr.rel (%p327) target = $region40
    $region39: #{patch_embedding_forward.1} parent=5 // pred_region
      %s330 = ssub.s32 %s9, 2
      // Predicated region
      $region41: #{patch_embedding_forward.1} parent=39 // pred_check
        %p331 = pneg %p106
      $region42: #{patch_embedding_forward.1} parent=39 // pred_check_branch
        %333 = sbr.rel (%p331) target = $region44
      $region43: #{patch_embedding_forward.1} parent=39 // pred_region
        %p334 = scmp.lt.s32.totalorder %s15, 1
        %s335 = scalar_select %p334, %s15, 1
        %s336 = smul.addr %s335, 8
        %s337 = smul.addr %s336, 8
        %s338 = scalar_lea.vmem %s3, %s337
      $region44: #{patch_embedding_forward.1} parent=39 // pred_fallthru
        _
    $region40: #{patch_embedding_forward.1} parent=5 // pred_fallthru
      _
  $region6: #{patch_embedding_forward.1} parent=0 // loop_footer
    %s13 = sadd.s32 1, %s9
  $region7: #{patch_embedding_forward.1} parent=0 // loop_footer_branch
    %8 = sbr.rel target = $region3
  $region8: #{patch_embedding_forward.1} parent=0 // loop_exit
    _

</llo_original>
